<compile_context>
chip_gen: v7x
topology: tpu7x:2x2x1
jax: 0.10.0
libtpu: 0.0.40
codegen_flags: <defaults>
</compile_context>

<pallas_src>
import functools

import numpy as np
import jax
import jax.numpy as jnp
from jax.experimental import pallas as pl
from jax.experimental.pallas import tpu as pltpu


def _round_up(x: int, m: int) -> int:
    return ((x + m - 1) // m) * m


@functools.lru_cache(maxsize=None)
def _vmem_capacity_bytes() -> int:
    """Physical VMEM capacity (128 MiB on v5e/v6e, 64 MiB per-TC on v7x)."""
    try:
        cap = int(pltpu.get_tpu_info().vmem_capacity_bytes)
        if cap > 0:
            return cap
    except Exception:
        pass
    return 64 * 1024 * 1024  # conservative fallback


@functools.lru_cache(maxsize=None)
def _analytic_operator_np(N: int, N_pad: int) -> np.ndarray:
    """[Re(A)^T | Im(A)^T] embedded in a zero-padded (N_pad, 2*N_pad) f32 matrix.

    analytic(x) = A @ x for a length-N real signal, A = IDFT @ diag(h) @ DFT.
    The kernel uses the row-vector form  y = x_row @ A^T.
    """
    n = np.arange(N)
    W = np.exp(-2j * np.pi * np.outer(n, n) / N)          # DFT
    Winv = np.exp(+2j * np.pi * np.outer(n, n) / N) / N   # IDFT
    h = np.zeros(N, dtype=np.float64)
    if N % 2 == 0:
        h[0] = 1.0
        h[1:N // 2] = 2.0
        h[N // 2] = 1.0
    else:
        h[0] = 1.0
        h[1:(N + 1) // 2] = 2.0
    A = Winv @ (h[:, None] * W)                            # (N, N) complex
    a_cat = np.zeros((N_pad, 2 * N_pad), dtype=np.float32)
    a_cat[:N, :N] = np.real(A).T
    a_cat[:N, N_pad:N_pad + N] = np.imag(A).T
    return a_cat


def _pick_tk(n_pad: int, max_tk: int = 512) -> int:
    """Largest multiple of 128 that divides n_pad and is <= max_tk."""
    q = n_pad // 128
    best = 1
    for d in range(1, q + 1):
        if q % d == 0 and 128 * d <= max_tk:
            best = d
    return 128 * best


def _hilbert_kernel(x_ref, a_ref, o_ref):
    # x_ref: (TM, Np)       one signal per row, length on lanes (compute dtype)
    # a_ref: (Np, 2*Np)     packed [Re(A)^T | Im(A)^T], VMEM-resident
    # o_ref: (TM, Np)       envelope, emitted in the input dtype
    n_pad = o_ref.shape[1]
    y = jnp.dot(x_ref[...], a_ref[...], preferred_element_type=jnp.float32)
    re = y[:, :n_pad]
    im = y[:, n_pad:]
    o_ref[...] = jnp.sqrt(re * re + im * im).astype(o_ref.dtype)


def _hilbert_kernel_ktiled(x_ref, a_ref, o_ref, acc_ref):
    # x_ref: (TM, TK), a_ref: (TK, 2*Np) streamed over K,
    # acc_ref: (TM, 2*Np) f32 accumulator, o_ref: (TM, Np)
    k = pl.program_id(1)

    @pl.when(k == 0)
    def _():
        acc_ref[...] = jnp.zeros_like(acc_ref)

    acc_ref[...] += jnp.dot(x_ref[...], a_ref[...],
                            preferred_element_type=jnp.float32)

    @pl.when(k == pl.num_programs(1) - 1)
    def _():
        n_pad = o_ref.shape[1]
        re = acc_ref[:, :n_pad]
        im = acc_ref[:, n_pad:]
        o_ref[...] = jnp.sqrt(re * re + im * im).astype(o_ref.dtype)


@functools.partial(jax.jit, static_argnames=("compute_dtype", "force_k_tiled"))
def hilbert_transform(x, compute_dtype=jnp.bfloat16, force_k_tiled=False):
    """x: (b, l, c) -> (b, l, c) envelope of the analytic signal along l."""
    b, l, c = x.shape
    N = l
    M = b * c
    out_dtype = x.dtype if jnp.issubdtype(x.dtype, jnp.floating) else jnp.float32

    N_pad = _round_up(max(N, 128), 128)   # lane-dense last dim
    M8 = _round_up(max(M, 1), 8)          # only sublane-align the row count
    TM = min(256, M8)                     # one full MXU pass; multiple of 8
    grid_m = pl.cdiv(M8, TM)              # ragged last tile allowed

    op_bytes = np.dtype(compute_dtype).itemsize
    out_bytes = np.dtype(out_dtype).itemsize

    a_cat = jnp.asarray(_analytic_operator_np(N, N_pad)).astype(compute_dtype)

    # Cast BEFORE the (b,l,c)->(b,c,l) transpose: the transpose is a pure HBM
    # pass, so moving bf16 instead of f32 halves its bandwidth (and the pad).
    x2d = jnp.transpose(x.astype(compute_dtype), (0, 2, 1)).reshape(M, N)
    x2d = jnp.pad(x2d, ((0, M8 - M), (0, N_pad - N)))

    vmem_budget = int(0.85 * _vmem_capacity_bytes())   # leave Mosaic headroom

    flops = 2 * M8 * N_pad * (2 * N_pad) + 3 * M8 * N_pad
    transcendentals = M8 * N_pad

    # Resident-operator VMEM estimate: x/out double-buffered, operator
    # single-buffered, f32 GEMM intermediate, 25% headroom for internal scratch.
    resident_est = int(1.25 * (
        2 * TM * N_pad * op_bytes
        + N_pad * 2 * N_pad * op_bytes
        + 2 * TM * N_pad * out_bytes
        + TM * 2 * N_pad * 4))
    use_resident = (not force_k_tiled) and resident_est <= vmem_budget

    if use_resident:
        vmem_limit = int(min(max(resident_est, 16 * 1024 * 1024), vmem_budget))
        out2d = pl.pallas_call(
            _hilbert_kernel,
            out_shape=jax.ShapeDtypeStruct((M8, N_pad), out_dtype),
            grid=(grid_m,),
            in_specs=[
                pl.BlockSpec((TM, N_pad), lambda i: (i, 0)),     # rows stream
                # grid-invariant operator: single-buffered, VMEM-resident
                pl.BlockSpec((N_pad, 2 * N_pad), lambda i: (0, 0),
                             pipeline_mode=pl.Buffered(1)),
            ],
            out_specs=pl.BlockSpec((TM, N_pad), lambda i: (i, 0)),
            compiler_params=pltpu.CompilerParams(
                dimension_semantics=("parallel",),
                vmem_limit_bytes=vmem_limit,
            ),
            cost_estimate=pl.CostEstimate(
                flops=flops,
                transcendentals=transcendentals,
                bytes_accessed=(M8 * N_pad * op_bytes
                                + 2 * N_pad * N_pad * op_bytes
                                + M8 * N_pad * out_bytes),
            ),
        )(x2d, a_cat)
    else:
        # K-tiled path: stream operator blocks over the contraction dim with an
        # f32 VMEM accumulator (needed once the resident operator outgrows
        # VMEM -- at roughly half the N on v7x's 64 MiB vs v5e/v6e's 128 MiB).
        TK = 128 if force_k_tiled else _pick_tk(N_pad)
        grid_k = N_pad // TK
        ktiled_est = int(1.25 * (
            2 * TM * TK * op_bytes
            + 2 * TK * 2 * N_pad * op_bytes
            + 2 * TM * N_pad * out_bytes
            + TM * 2 * N_pad * 4))
        vmem_limit = int(min(max(ktiled_est, 16 * 1024 * 1024), vmem_budget))
        out2d = pl.pallas_call(
            _hilbert_kernel_ktiled,
            out_shape=jax.ShapeDtypeStruct((M8, N_pad), out_dtype),
            grid=(grid_m, grid_k),
            in_specs=[
                pl.BlockSpec((TM, TK), lambda i, k: (i, k)),
                pl.BlockSpec((TK, 2 * N_pad), lambda i, k: (k, 0)),
            ],
            out_specs=pl.BlockSpec((TM, N_pad), lambda i, k: (i, 0)),
            scratch_shapes=[pltpu.VMEM((TM, 2 * N_pad), jnp.float32)],
            compiler_params=pltpu.CompilerParams(
                dimension_semantics=("parallel", "arbitrary"),
                vmem_limit_bytes=vmem_limit,
            ),
            cost_estimate=pl.CostEstimate(
                flops=flops,
                transcendentals=transcendentals,
                bytes_accessed=(M8 * N_pad * op_bytes
                                + grid_m * 2 * N_pad * N_pad * op_bytes
                                + M8 * N_pad * out_bytes),
            ),
        )(x2d, a_cat)

    # TODO(synk): optional fp8 (e4m3) operand path on v7x (another 2x operator
    # VMEM / MXU throughput) and a transpose-free channel-major layout
    # (contract over l with c on lanes) for channel-heavy inputs (c >= ~128).
    out = out2d[:M, :N].reshape(b, c, l)      # ragged-tile garbage rows sliced off
    return jnp.transpose(out, (0, 2, 1)).astype(out_dtype)


def _reference(x):
    """Pure-JAX reference mirroring the PyTorch module (FFT-based)."""
    xt = jnp.transpose(x, (0, 2, 1))          # (b, c, l)
    N = xt.shape[-1]
    Xf = jnp.fft.fft(xt, axis=2)
    h = np.zeros(N, dtype=np.float32)
    if N % 2 == 0:
        h[0] = 1.0
        h[1:N // 2] = 2.0
        h[N // 2] = 1.0
    else:
        h[0] = 1.0
        h[1:(N + 1) // 2] = 2.0
    Xf = Xf * jnp.asarray(h)[None, None, :]
    env = jnp.abs(jnp.fft.ifft(Xf, axis=2))
    return jnp.transpose(env, (0, 2, 1))      # (b, l, c)


if __name__ == "__main__":
    key = jax.random.PRNGKey(0)
    b, l, c = 2, 16, 4                        # batch, in_dim (length), in_channels
    x = jax.random.normal(key, (b, l, c), dtype=jnp.float32)

    ref = jax.block_until_ready(_reference(x))

    # Default (performance) path: bf16 MXU operands, f32 accumulation.
    out_bf16 = jax.block_until_ready(hilbert_transform(x))
    assert out_bf16.shape == (b, l, c), out_bf16.shape
    assert np.allclose(np.asarray(out_bf16), np.asarray(ref), atol=5e-2, rtol=5e-2), (
        "bf16 path mismatch vs FFT reference"
    )

    # Full-precision path: verifies exact operator semantics.
    out_f32 = jax.block_until_ready(hilbert_transform(x, compute_dtype=jnp.float32))
    assert np.allclose(np.asarray(out_f32), np.asarray(ref), atol=1e-4, rtol=1e-4), (
        "f32 path mismatch vs FFT reference"
    )

    # K-tiled (streamed-operator) path, forced at small N so the multi-step
    # accumulator logic is exercised even though it only auto-enables at large N.
    b2, l2, c2 = 2, 320, 4
    x2 = jax.random.normal(jax.random.PRNGKey(1), (b2, l2, c2), dtype=jnp.float32)
    ref2 = jax.block_until_ready(_reference(x2))
    out_kt = jax.block_until_ready(
        hilbert_transform(x2, compute_dtype=jnp.float32, force_k_tiled=True))
    assert out_kt.shape == (b2, l2, c2), out_kt.shape
    assert np.allclose(np.asarray(out_kt), np.asarray(ref2), atol=5e-3, rtol=5e-3), (
        "K-tiled path mismatch vs FFT reference"
    )

    print("KERNEL_OK")
</pallas_src>

<mosaic_0001>
module attributes {stable_mosaic.version = 11 : i64} {
  func.func @_hilbert_kernel(%arg0: i32, %arg1: memref<8x128xbf16, #tpu.memory_space<vmem>>, %arg2: memref<128x256xbf16, #tpu.memory_space<vmem>>, %arg3: memref<8x128xf32, #tpu.memory_space<vmem>>) attributes {dimension_semantics = [#tpu.dimension_semantics<parallel>], iteration_bounds = array<i64: 1>, scalar_prefetch = 0 : i64, scratch_operands = 0 : i64, tpu.core_type = #tpu.core_type<tc>, window_params = [{transform_indices = @transform_0, window_bounds = array<i64: 8, 128>}, {pipeline_mode = #tpu.pipeline_mode<synchronous>, transform_indices = @transform_1, window_bounds = array<i64: 128, 256>}, {transform_indices = @transform_2, window_bounds = array<i64: 8, 128>}]} {
    %c0 = arith.constant 0 : index
    %c0_0 = arith.constant 0 : index
    %0 = vector.load %arg1[%c0, %c0_0] : memref<8x128xbf16, #tpu.memory_space<vmem>>, vector<8x128xbf16>
    %c0_1 = arith.constant 0 : index
    %c0_2 = arith.constant 0 : index
    %1 = vector.load %arg2[%c0_1, %c0_2] : memref<128x256xbf16, #tpu.memory_space<vmem>>, vector<128x256xbf16>
    %cst = arith.constant dense<0.000000e+00> : vector<8x256xf32>
    %2 = tpu.matmul %0, %1, %cst {dimension_numbers = #tpu.dot_dimension_numbers<[1], [0], [0], [1], [0, 0, 1, 1], [], []>} : vector<8x128xbf16>, vector<128x256xbf16>, vector<8x256xf32> -> vector<8x256xf32>
    %3 = vector.extract_strided_slice %2 {offsets = [0, 0], sizes = [8, 128], strides = [1, 1]} : vector<8x256xf32> to vector<8x128xf32>
    %4 = vector.extract_strided_slice %2 {offsets = [0, 128], sizes = [8, 128], strides = [1, 1]} : vector<8x256xf32> to vector<8x128xf32>
    %5 = arith.mulf %3, %3 : vector<8x128xf32>
    %6 = arith.mulf %4, %4 : vector<8x128xf32>
    %7 = arith.addf %5, %6 : vector<8x128xf32>
    %8 = math.sqrt %7 : vector<8x128xf32>
    %c0_3 = arith.constant 0 : index
    %c0_4 = arith.constant 0 : index
    %9 = vector.load %arg3[%c0_3, %c0_4] : memref<8x128xf32, #tpu.memory_space<vmem>>, vector<8x128xf32>
    tpu.vector_store %arg3[%c0_3, %c0_4], %8 {strides = array<i32>} : memref<8x128xf32, #tpu.memory_space<vmem>>, vector<8x128xf32>,
    return
  }
  func.func @transform_0(%arg0: i32) -> (i32, i32) {
    %c0_i32 = arith.constant 0 : i32
    %c0_i32_0 = arith.constant 0 : i32
    return %arg0, %c0_i32 : i32, i32
  }
  func.func @transform_1(%arg0: i32) -> (i32, i32) {
    %c0_i32 = arith.constant 0 : i32
    %c0_i32_0 = arith.constant 0 : i32
    %c0_i32_1 = arith.constant 0 : i32
    return %c0_i32, %c0_i32_0 : i32, i32
  }
  func.func @transform_2(%arg0: i32) -> (i32, i32) {
    %c0_i32 = arith.constant 0 : i32
    %c0_i32_0 = arith.constant 0 : i32
    return %arg0, %c0_i32 : i32, i32
  }
}

</mosaic_0001>

<llo_original>
// kernel: hilbert_transform.1
$region0: #{hilbert_transform.1}
  #allocation0 [shape = 'u32[]', space=smem, size = 0x4, offset = 0x4, fixed_abs, tag = 'smem constant byte address 0x4 - core index']
  #allocation1 [shape = 'u32[144,128]{1,0:T(1,128)}', space=vmem, size = 0x12000, scoped, tag = 'internal scratch']
  %s0 = inlined_call_operand.vmem [shape: bf16[8,128], index: 0, kind: input, shape index: {}]
  %s1 = inlined_call_operand.vmem [shape: bf16[128,256], index: 1, kind: input, shape index: {}]
  %s2 = inlined_call_operand.hbm [shape: f32[8,128], index: 2, kind: output, shape index: {}]
  %s3 = sld [smem:[#allocation0]]
  $region18: #{hilbert_transform.1} parent=0
    _
  %s5 = ssub.s32 1, %s3
  %s6 = scalar_select 0, %s5, %s3
  $region1: #{hilbert_transform.1} parent=0
    #allocation2 [shape = 'u8[4096]{0}', space=vmem, size = 0x1000, scoped, tag = 'output window, operand 0, single buffered']
    #allocation3 [shape = 's32[1]{0}', space=sflag, size = 0x4, scoped, tag = 'scoped memory for hilbert_transform.1']
    %7 = vsyncpa [#allocation3], 0
    // Predicated region
    $region2: #{hilbert_transform.1} parent=1 // pred_check
      _
    $region3: #{hilbert_transform.1} parent=1 // pred_check_branch
      %9 = sbr.rel (0) target = $region5
    $region4: #{hilbert_transform.1} parent=1 // pred_region
      _
    $region5: #{hilbert_transform.1} parent=1 // pred_fallthru
      _
    // Predicated region
    $region6: #{hilbert_transform.1} parent=1 // pred_check
      _
    $region7: #{hilbert_transform.1} parent=1 // pred_check_branch
      %11 = sbr.rel (0) target = $region9
    $region8: #{hilbert_transform.1} parent=1 // pred_region
      _
    $region9: #{hilbert_transform.1} parent=1 // pred_fallthru
      _
    %v13 = vld [vmem:[%s0] sm:$0xf]
    %v14 = vld [vmem:[%s1] sm:$0xff]
    %v15 = vld [vmem:[%s1 + $0x8] sm:$0xff]
    %v16 = vld [vmem:[%s1 + $0x10] sm:$0xff]
    %v17 = vld [vmem:[%s1 + $0x18] sm:$0xff]
    %v18 = vld [vmem:[%s1 + $0x20] sm:$0xff]
    %v19 = vld [vmem:[%s1 + $0x28] sm:$0xff]
    %v20 = vld [vmem:[%s1 + $0x30] sm:$0xff]
    %v21 = vld [vmem:[%s1 + $0x38] sm:$0xff]
    %v22 = vld [vmem:[%s1 + $0x40] sm:$0xff]
    %v23 = vld [vmem:[%s1 + $0x48] sm:$0xff]
    %v24 = vld [vmem:[%s1 + $0x50] sm:$0xff]
    %v25 = vld [vmem:[%s1 + $0x58] sm:$0xff]
    %v26 = vld [vmem:[%s1 + $0x60] sm:$0xff]
    %v27 = vld [vmem:[%s1 + $0x68] sm:$0xff]
    %v28 = vld [vmem:[%s1 + $0x70] sm:$0xff]
    %v29 = vld [vmem:[%s1 + $0x78] sm:$0xff]
    %v46 = vunpack.c.l.b16 %v14
    %v47 = vunpack.c.h.b16 %v14
    %v48 = vunpack.c.l.b16 %v15
    %v49 = vunpack.c.h.b16 %v15
    %v50 = vunpack.c.l.b16 %v16
    %v51 = vunpack.c.h.b16 %v16
    %v52 = vunpack.c.l.b16 %v17
    %v53 = vunpack.c.h.b16 %v17
    %v54 = vunpack.c.l.b16 %v18
    %v55 = vunpack.c.h.b16 %v18
    %v56 = vunpack.c.l.b16 %v19
    %v57 = vunpack.c.h.b16 %v19
    %v58 = vunpack.c.l.b16 %v20
    %v59 = vunpack.c.h.b16 %v20
    %v60 = vunpack.c.l.b16 %v21
    %v61 = vunpack.c.h.b16 %v21
    %v62 = vunpack.c.l.b16 %v22
    %v63 = vunpack.c.h.b16 %v22
    %v64 = vunpack.c.l.b16 %v23
    %v65 = vunpack.c.h.b16 %v23
    %v66 = vunpack.c.l.b16 %v24
    %v67 = vunpack.c.h.b16 %v24
    %v68 = vunpack.c.l.b16 %v25
    %v69 = vunpack.c.h.b16 %v25
    %v70 = vunpack.c.l.b16 %v26
    %v71 = vunpack.c.h.b16 %v26
    %v72 = vunpack.c.l.b16 %v27
    %v73 = vunpack.c.h.b16 %v27
    %v74 = vunpack.c.l.b16 %v28
    %v75 = vunpack.c.h.b16 %v28
    %v76 = vunpack.c.l.b16 %v29
    %v77 = vunpack.c.h.b16 %v29
    %v78 = vpack.c.b16 %v48, %v46
    %v79 = vpack.c.b16 %v49, %v47
    %v80 = vpack.c.b16 %v52, %v50
    %v81 = vpack.c.b16 %v53, %v51
    %v82 = vpack.c.b16 %v56, %v54
    %v83 = vpack.c.b16 %v57, %v55
    %v84 = vpack.c.b16 %v60, %v58
    %v85 = vpack.c.b16 %v61, %v59
    %v86 = vpack.c.b16 %v64, %v62
    %v87 = vpack.c.b16 %v65, %v63
    %v88 = vpack.c.b16 %v68, %v66
    %v89 = vpack.c.b16 %v69, %v67
    %v90 = vpack.c.b16 %v72, %v70
    %v91 = vpack.c.b16 %v73, %v71
    %v92 = vpack.c.b16 %v76, %v74
    %v93 = vpack.c.b16 %v77, %v75
    %110 = vmatprep.subr.bf16.mxu0 %v79
    %111 = vmatpush1.bf16.msra.mxu0 %v78
    %112 = vmatprep.subr.bf16.mxu0 %v81
    %113 = vmatpush1.bf16.msra.mxu0 %v80
    %114 = vmatprep.subr.bf16.mxu0 %v83
    %115 = vmatpush1.bf16.msra.mxu0 %v82
    %116 = vmatprep.subr.bf16.mxu0 %v85
    %117 = vmatpush1.bf16.msra.mxu0 %v84
    %118 = vmatprep.subr.bf16.mxu0 %v87
    %119 = vmatpush1.bf16.msra.mxu0 %v86
    %120 = vmatprep.subr.bf16.mxu0 %v89
    %121 = vmatpush1.bf16.msra.mxu0 %v88
    %122 = vmatprep.subr.bf16.mxu0 %v91
    %123 = vmatpush1.bf16.msra.mxu0 %v90
    %124 = vmatprep.subr.bf16.mxu0 %v93
    %125 = vmatpush1.bf16.msra.mxu0 %v92
    %126 = vmatprep.subr.bf16.mxu0 0
    %127 = vmatpush1.bf16.msra.mxu0 0
    %128 = vmatprep.subr.bf16.mxu0 0
    %129 = vmatpush1.bf16.msra.mxu0 0
    %130 = vmatprep.subr.bf16.mxu0 0
    %131 = vmatpush1.bf16.msra.mxu0 0
    %132 = vmatprep.subr.bf16.mxu0 0
    %133 = vmatpush1.bf16.msra.mxu0 0
    %134 = vmatprep.subr.bf16.mxu0 0
    %135 = vmatpush1.bf16.msra.mxu0 0
    %136 = vmatprep.subr.bf16.mxu0 0
    %137 = vmatpush1.bf16.msra.mxu0 0
    %138 = vmatprep.subr.bf16.mxu0 0
    %139 = vmatpush1.bf16.msra.mxu0 0
    %140 = vmatprep.subr.bf16.mxu0 0
    %141 = vmatpush1.bf16.msra.mxu0 0
    %142 = vmatprep.mubr.bf16.mxu0 0
    %143 = vmatmul.mubr.bf16.gmra.mrb[0].mxu0 %v13
    %v144 = vpop.f32.mrb[0].mxu0
    %v145 = vadd.f32 0.0, %v144
    %v146 = vpop.f32.mrb[0].mxu0
    %v147 = vadd.f32 0.0, %v146
    %v148 = vpop.f32.mrb[0].mxu0
    %v149 = vpop.f32.mrb[0].mxu0
    %150 = vdwg.mxu0
    %v151 = vmul.f32 %v145, %v145
    %v152 = vmul.f32 %v147, %v147
    %v153 = vadd.f32 %v151, %v152
    %v154 = vrsqrt.pop %v153
    %v155 = vmul.f32 %v153, %v154
    %vm156 = vcmp.eq.f32.partialorder %v153, inf
    %v157 = vsel %vm156, %v153, %v155
    %vm158 = vcmp.eq.f32.partialorder %v153, 0.0
    %v159 = vand.u32 %v153, 2147483648
    %v160 = vsel %vm158, %v159, %v157
    %161 = vst [vmem:[#allocation2] sm:$0xff] %v160
    // Predicated region
    $region10: #{hilbert_transform.1} parent=1 // pred_check
      _
    $region11: #{hilbert_transform.1} parent=1 // pred_check_branch
      %163 = sbr.rel (0) target = $region13
    $region12: #{hilbert_transform.1} parent=1 // pred_region
      %s165 = ssub.s32 128, 128
      %166 = vsyncadd [#allocation3], %s165
      %s168 = sshll.u32 [#allocation2], 4
      %s169 = int_to_ptr.vmem [resolvable:$true] %s168
      %171 = dma.vmem_to_hbm [thread:$0]  %s169, 128, %s2, [#allocation3]
    $region13: #{hilbert_transform.1} parent=1 // pred_fallthru
      _
    // Predicated region
    $region14: #{hilbert_transform.1} parent=1 // pred_check
      _
    $region15: #{hilbert_transform.1} parent=1 // pred_check_branch
      %173 = sbr.rel (0) target = $region17
    $region16: #{hilbert_transform.1} parent=1 // pred_region
      %174 = dma.done [#allocation3], 128
    $region17: #{hilbert_transform.1} parent=1 // pred_fallthru
      _
    %175 = vsyncpa [#allocation3], 1

</llo_original>
